<compile_context>
chip_gen: v5e
topology: v5e:2x2
jax: 0.10.0
libtpu: 0.0.40
codegen_flags: <defaults>
</compile_context>

<pallas_src>
import jax
import jax.numpy as jnp
from jax.experimental import pallas as pl
from jax.experimental.pallas import tpu as pltpu

ALPHA = 0.005
BETA = 0.05
BETA_VOCALS = 0.08

_LANE = 128
_SUBLANE = 8
# (2048, 128) f32 tile = 1 MiB; 7 inputs x 2 pipeline buffers = 14 MiB VMEM.
_MAX_TILE_ROWS = 2048
_VMEM_LIMIT_BYTES = 40 * 1024 * 1024


def _make_kernel(tile_rows, tiles_per_split, rows_valid, needs_mask):
    """Build the loss kernel for a fixed (static) tiling configuration."""

    def kernel(pb_ref, pv_ref, pd_ref, gb_ref, gv_ref, gd_ref, go_ref,
               out_ref, acc_ref):
        i = pl.program_id(1)

        @pl.when(i == 0)
        def _init():
            acc_ref[...] = jnp.zeros_like(acc_ref)

        pb = pb_ref[...].astype(jnp.float32)
        pv = pv_ref[...].astype(jnp.float32)
        pd = pd_ref[...].astype(jnp.float32)
        gb = gb_ref[...].astype(jnp.float32)
        gv = gv_ref[...].astype(jnp.float32)
        gd = gd_ref[...].astype(jnp.float32)
        go = go_ref[...].astype(jnp.float32)

        d1 = pb - gb
        d2 = pv - gv
        d3 = pd - gd
        o1 = pb - go
        o2 = pd - go
        ov = pv - go
        f1 = pb - pv
        f2 = pb - pd
        f3 = pv - pd

        # Single fused elementwise accumulator (all VPU work).
        elem = (d1 * d1 + d2 * d2 + d3 * d3
                - ALPHA * (f1 * f1 + f2 * f2 + f3 * f3)
                - BETA * (o1 * o1 + o2 * o2)
                - BETA_VOCALS * (ov * ov))

        if needs_mask:
            # Ragged last block / phantom blocks of the uneven 2-way core
            # split: zero out every row at or past the (static) valid count.
            base = (pl.program_id(0) * tiles_per_split + i) * tile_rows
            row_ids = base + jax.lax.broadcasted_iota(
                jnp.int32, (tile_rows, _LANE), 0)
            elem = jnp.where(row_ids < rows_valid, elem, 0.0)

        # Fold sublane-groups of 8 rows into the (8,128) accumulator.
        # tile_rows is always a multiple of 8, so this is a layout-preserving
        # reshape followed by pure vreg adds (no cross-lane/sublane XLU work).
        acc_ref[...] += elem.reshape(-1, _SUBLANE, _LANE).sum(axis=0)

        @pl.when(i == pl.num_programs(1) - 1)
        def _finalize():
            out_ref[...] = acc_ref[...]   # aligned, unmasked (8,128) store

    return kernel


def _choose_tiling(rows):
    """Pick (padded_rows, tile_rows, tiles, nsplit, tiles_per_split)."""
    if rows < _SUBLANE:
        rows = _SUBLANE                    # tiny input: pad slab to one (8,128) tile
    if rows % _SUBLANE == 0 and rows <= _MAX_TILE_ROWS:
        tile_rows = rows                   # single full-extent block
    else:
        tile_rows = min(_MAX_TILE_ROWS, (rows // _SUBLANE) * _SUBLANE)
    tiles = pl.cdiv(rows, tile_rows)
    # Always split across 2 TensorCores when there is more than one tile;
    # phantom / ragged blocks are masked inside the kernel.
    nsplit = 2 if tiles >= 2 else 1
    tiles_per_split = pl.cdiv(tiles, nsplit)
    return rows, tile_rows, tiles, nsplit, tiles_per_split


def _flatten_to_slab(x, rows):
    """Reshape to a lane-dense (rows, 128) slab; pad only if strictly needed."""
    flat = x.reshape(-1)
    need = rows * _LANE
    if flat.shape[0] != need:
        # Only when n is not a multiple of 128 (or n < 1024): pad with zeros
        # so the (rows, 128) reshape is legal.  Zero padding is correctness-
        # safe: all tensors are padded identically, so padded differences are
        # exactly 0 and contribute nothing to the loss.
        # TODO(synk): this still materializes a copy for non-multiple-of-128
        # element counts; unavoidable without a 1-D kernel layout.
        flat = jnp.pad(flat, (0, need - flat.shape[0]))
    return flat.reshape(rows, _LANE)


@jax.jit
def mixed_squared_error(pred_bass, pred_vocals, pred_drums, pred_others,
                        gt_bass, gt_vocals, gt_drums, gt_others):
    del pred_others  # unused in the reference forward()

    tensors = (pred_bass, pred_vocals, pred_drums,
               gt_bass, gt_vocals, gt_drums, gt_others)
    n_elems = pred_bass.size
    for t in tensors:
        assert t.size == n_elems, "all inputs must have identical element count"

    rows_raw = pl.cdiv(n_elems, _LANE)
    rows, tile_rows, tiles, nsplit, tiles_per_split = _choose_tiling(rows_raw)
    last_block = tiles - 1
    needs_mask = (nsplit * tiles_per_split * tile_rows) != rows

    slabs = [_flatten_to_slab(t, rows) for t in tensors]

    def in_index_map(c, i):
        # Clamp so phantom blocks of an uneven split stay in-bounds; their
        # contribution is masked to zero inside the kernel.
        return (jnp.minimum(c * tiles_per_split + i, last_block), 0)

    in_spec = pl.BlockSpec((tile_rows, _LANE), in_index_map)
    out_spec = pl.BlockSpec((_SUBLANE, _LANE), lambda c, i: (c, 0))

    kernel = _make_kernel(tile_rows, tiles_per_split, rows, needs_mask)

    bytes_accessed = sum(int(s.size) * s.dtype.itemsize for s in slabs)
    bytes_accessed += nsplit * _SUBLANE * _LANE * 4
    cost = pl.CostEstimate(flops=30 * int(n_elems),
                           transcendentals=0,
                           bytes_accessed=int(bytes_accessed))

    partials = pl.pallas_call(
        kernel,
        out_shape=jax.ShapeDtypeStruct((nsplit * _SUBLANE, _LANE), jnp.float32),
        grid_spec=pltpu.PrefetchScalarGridSpec(
            num_scalar_prefetch=0,
            grid=(nsplit, tiles_per_split),
            in_specs=[in_spec] * 7,
            out_specs=out_spec,
            scratch_shapes=[pltpu.VMEM((_SUBLANE, _LANE), jnp.float32)],
        ),
        compiler_params=pltpu.CompilerParams(
            dimension_semantics=("parallel", "arbitrary"),
            vmem_limit_bytes=_VMEM_LIMIT_BYTES),
        cost_estimate=cost,
    )(*slabs)

    # Final tiny reduction of the lane-dense per-core partials.
    return jnp.sum(partials)


def _reference(pred_bass, pred_vocals, pred_drums, pred_others,
               gt_bass, gt_vocals, gt_drums, gt_others):
    del pred_others
    ssq = lambda a, b: jnp.sum((a.astype(jnp.float32) -
                                b.astype(jnp.float32)) ** 2)
    l_sq = ssq(pred_bass, gt_bass) + ssq(pred_vocals, gt_vocals) + \
        ssq(pred_drums, gt_drums)
    l_other = ssq(pred_bass, gt_others) + ssq(pred_drums, gt_others)
    l_othervocals = ssq(pred_vocals, gt_others)
    l_diff = ssq(pred_bass, pred_vocals) + ssq(pred_bass, pred_drums) + \
        ssq(pred_vocals, pred_drums)
    return (l_sq - ALPHA * l_diff - BETA * l_other
            - BETA_VOCALS * l_othervocals)


if __name__ == "__main__":
    key = jax.random.PRNGKey(0)

    def run_case(shape):
        keys = jax.random.split(key, 8)
        tensors = [jax.random.normal(k, shape, dtype=jnp.float32) for k in keys]
        loss = mixed_squared_error(*tensors)
        loss = jax.block_until_ready(loss)
        ref = _reference(*tensors)
        assert jnp.allclose(loss, ref, rtol=1e-4, atol=1e-2), (shape, loss, ref)

    # Main case: NCHW batch=2, channels=4, 16x16 spatial (zero-copy slab path).
    run_case((2, 4, 16, 16))
    # Ragged case: exercises minimal tail pad + masked ragged block + 2-way split.
    run_case((2, 4, 130, 130))
    # Tiny case: exercises the sub-(8,128) slab padding path.
    run_case((2, 3, 7, 11))

    print("KERNEL_OK")
</pallas_src>

<mosaic_0001>
module attributes {stable_mosaic.version = 11 : i64} {
  func.func @kernel(%arg0: i32, %arg1: i32, %arg2: memref<16x128xf32, #tpu.memory_space<vmem>>, %arg3: memref<16x128xf32, #tpu.memory_space<vmem>>, %arg4: memref<16x128xf32, #tpu.memory_space<vmem>>, %arg5: memref<16x128xf32, #tpu.memory_space<vmem>>, %arg6: memref<16x128xf32, #tpu.memory_space<vmem>>, %arg7: memref<16x128xf32, #tpu.memory_space<vmem>>, %arg8: memref<16x128xf32, #tpu.memory_space<vmem>>, %arg9: memref<8x128xf32, #tpu.memory_space<vmem>>, %arg10: memref<8x128xf32, #tpu.memory_space<vmem>>) attributes {dimension_semantics = [#tpu.dimension_semantics<parallel>, #tpu.dimension_semantics<arbitrary>], iteration_bounds = array<i64: 1, 1>, scalar_prefetch = 0 : i64, scratch_operands = 1 : i64, tpu.core_type = #tpu.core_type<tc>, window_params = [{transform_indices = @transform_0, window_bounds = array<i64: 16, 128>}, {transform_indices = @transform_1, window_bounds = array<i64: 16, 128>}, {transform_indices = @transform_2, window_bounds = array<i64: 16, 128>}, {transform_indices = @transform_3, window_bounds = array<i64: 16, 128>}, {transform_indices = @transform_4, window_bounds = array<i64: 16, 128>}, {transform_indices = @transform_5, window_bounds = array<i64: 16, 128>}, {transform_indices = @transform_6, window_bounds = array<i64: 16, 128>}, {transform_indices = @transform_7, window_bounds = array<i64: 8, 128>}]} {
    %c0_i32 = arith.constant 0 : i32
    %0 = arith.cmpi eq, %arg1, %c0_i32 : i32
    %1 = arith.extui %0 : i1 to i32
    %c0_i32_0 = arith.constant 0 : i32
    %2 = arith.cmpi ne, %1, %c0_i32_0 : i32
    scf.if %2 {
      %cst_23 = arith.constant 0.000000e+00 : f32
      %50 = vector.broadcast %cst_23 : f32 to vector<8x128xf32>
      %c0_24 = arith.constant 0 : index
      %c0_25 = arith.constant 0 : index
      %51 = vector.load %arg10[%c0_24, %c0_25] : memref<8x128xf32, #tpu.memory_space<vmem>>, vector<8x128xf32>
      tpu.vector_store %arg10[%c0_24, %c0_25], %50 {strides = array<i32>} : memref<8x128xf32, #tpu.memory_space<vmem>>, vector<8x128xf32>,
    } else {
    }
    %c0 = arith.constant 0 : index
    %c0_1 = arith.constant 0 : index
    %3 = vector.load %arg2[%c0, %c0_1] : memref<16x128xf32, #tpu.memory_space<vmem>>, vector<16x128xf32>
    %c0_2 = arith.constant 0 : index
    %c0_3 = arith.constant 0 : index
    %4 = vector.load %arg3[%c0_2, %c0_3] : memref<16x128xf32, #tpu.memory_space<vmem>>, vector<16x128xf32>
    %c0_4 = arith.constant 0 : index
    %c0_5 = arith.constant 0 : index
    %5 = vector.load %arg4[%c0_4, %c0_5] : memref<16x128xf32, #tpu.memory_space<vmem>>, vector<16x128xf32>
    %c0_6 = arith.constant 0 : index
    %c0_7 = arith.constant 0 : index
    %6 = vector.load %arg5[%c0_6, %c0_7] : memref<16x128xf32, #tpu.memory_space<vmem>>, vector<16x128xf32>
    %c0_8 = arith.constant 0 : index
    %c0_9 = arith.constant 0 : index
    %7 = vector.load %arg6[%c0_8, %c0_9] : memref<16x128xf32, #tpu.memory_space<vmem>>, vector<16x128xf32>
    %c0_10 = arith.constant 0 : index
    %c0_11 = arith.constant 0 : index
    %8 = vector.load %arg7[%c0_10, %c0_11] : memref<16x128xf32, #tpu.memory_space<vmem>>, vector<16x128xf32>
    %c0_12 = arith.constant 0 : index
    %c0_13 = arith.constant 0 : index
    %9 = vector.load %arg8[%c0_12, %c0_13] : memref<16x128xf32, #tpu.memory_space<vmem>>, vector<16x128xf32>
    %10 = arith.subf %3, %6 : vector<16x128xf32>
    %11 = arith.subf %4, %7 : vector<16x128xf32>
    %12 = arith.subf %5, %8 : vector<16x128xf32>
    %13 = arith.subf %3, %9 : vector<16x128xf32>
    %14 = arith.subf %5, %9 : vector<16x128xf32>
    %15 = arith.subf %4, %9 : vector<16x128xf32>
    %16 = arith.subf %3, %4 : vector<16x128xf32>
    %17 = arith.subf %3, %5 : vector<16x128xf32>
    %18 = arith.subf %4, %5 : vector<16x128xf32>
    %19 = arith.mulf %10, %10 : vector<16x128xf32>
    %20 = arith.mulf %11, %11 : vector<16x128xf32>
    %21 = arith.addf %19, %20 : vector<16x128xf32>
    %22 = arith.mulf %12, %12 : vector<16x128xf32>
    %23 = arith.addf %21, %22 : vector<16x128xf32>
    %24 = arith.mulf %16, %16 : vector<16x128xf32>
    %25 = arith.mulf %17, %17 : vector<16x128xf32>
    %26 = arith.addf %24, %25 : vector<16x128xf32>
    %27 = arith.mulf %18, %18 : vector<16x128xf32>
    %28 = arith.addf %26, %27 : vector<16x128xf32>
    %cst = arith.constant 5.000000e-03 : f32
    %29 = vector.broadcast %cst : f32 to vector<16x128xf32>
    %30 = arith.mulf %29, %28 : vector<16x128xf32>
    %31 = arith.subf %23, %30 : vector<16x128xf32>
    %32 = arith.mulf %13, %13 : vector<16x128xf32>
    %33 = arith.mulf %14, %14 : vector<16x128xf32>
    %34 = arith.addf %32, %33 : vector<16x128xf32>
    %cst_14 = arith.constant 5.000000e-02 : f32
    %35 = vector.broadcast %cst_14 : f32 to vector<16x128xf32>
    %36 = arith.mulf %35, %34 : vector<16x128xf32>
    %37 = arith.subf %31, %36 : vector<16x128xf32>
    %38 = arith.mulf %15, %15 : vector<16x128xf32>
    %cst_15 = arith.constant 8.000000e-02 : f32
    %39 = vector.broadcast %cst_15 : f32 to vector<16x128xf32>
    %40 = arith.mulf %39, %38 : vector<16x128xf32>
    %41 = arith.subf %37, %40 : vector<16x128xf32>
    %c0_16 = arith.constant 0 : index
    %c0_17 = arith.constant 0 : index
    %42 = vector.load %arg10[%c0_16, %c0_17] : memref<8x128xf32, #tpu.memory_space<vmem>>, vector<8x128xf32>
    %43 = vector.shape_cast %41 : vector<16x128xf32> to vector<2x8x128xf32>
    %cst_18 = arith.constant dense<0.000000e+00> : vector<8x128xf32>
    %44 = vector.multi_reduction <add>, %43, %cst_18 [0] : vector<2x8x128xf32> to vector<8x128xf32>
    %45 = arith.addf %42, %44 : vector<8x128xf32>
    %c0_19 = arith.constant 0 : index
    %c0_20 = arith.constant 0 : index
    %46 = vector.load %arg10[%c0_19, %c0_20] : memref<8x128xf32, #tpu.memory_space<vmem>>, vector<8x128xf32>
    tpu.vector_store %arg10[%c0_19, %c0_20], %45 {strides = array<i32>} : memref<8x128xf32, #tpu.memory_space<vmem>>, vector<8x128xf32>,
    %c0_i32_21 = arith.constant 0 : i32
    %47 = arith.cmpi eq, %arg1, %c0_i32_21 : i32
    %48 = arith.extui %47 : i1 to i32
    %c0_i32_22 = arith.constant 0 : i32
    %49 = arith.cmpi ne, %48, %c0_i32_22 : i32
    scf.if %49 {
      %c0_23 = arith.constant 0 : index
      %c0_24 = arith.constant 0 : index
      %50 = vector.load %arg10[%c0_23, %c0_24] : memref<8x128xf32, #tpu.memory_space<vmem>>, vector<8x128xf32>
      %c0_25 = arith.constant 0 : index
      %c0_26 = arith.constant 0 : index
      %51 = vector.load %arg9[%c0_25, %c0_26] : memref<8x128xf32, #tpu.memory_space<vmem>>, vector<8x128xf32>
      tpu.vector_store %arg9[%c0_25, %c0_26], %50 {strides = array<i32>} : memref<8x128xf32, #tpu.memory_space<vmem>>, vector<8x128xf32>,
    } else {
    }
    return
  }
  func.func @transform_0(%arg0: i32, %arg1: i32) -> (i32, i32) {
    %c1_i32 = arith.constant 1 : i32
    %0 = arith.muli %arg0, %c1_i32 : i32
    %1 = arith.addi %0, %arg1 : i32
    %c0_i32 = arith.constant 0 : i32
    %2 = arith.minsi %1, %c0_i32 : i32
    %c0_i32_0 = arith.constant 0 : i32
    %c0_i32_1 = arith.constant 0 : i32
    return %2, %c0_i32_0 : i32, i32
  }
  func.func @transform_1(%arg0: i32, %arg1: i32) -> (i32, i32) {
    %c1_i32 = arith.constant 1 : i32
    %0 = arith.muli %arg0, %c1_i32 : i32
    %1 = arith.addi %0, %arg1 : i32
    %c0_i32 = arith.constant 0 : i32
    %2 = arith.minsi %1, %c0_i32 : i32
    %c0_i32_0 = arith.constant 0 : i32
    %c0_i32_1 = arith.constant 0 : i32
    return %2, %c0_i32_0 : i32, i32
  }
  func.func @transform_2(%arg0: i32, %arg1: i32) -> (i32, i32) {
    %c1_i32 = arith.constant 1 : i32
    %0 = arith.muli %arg0, %c1_i32 : i32
    %1 = arith.addi %0, %arg1 : i32
    %c0_i32 = arith.constant 0 : i32
    %2 = arith.minsi %1, %c0_i32 : i32
    %c0_i32_0 = arith.constant 0 : i32
    %c0_i32_1 = arith.constant 0 : i32
    return %2, %c0_i32_0 : i32, i32
  }
  func.func @transform_3(%arg0: i32, %arg1: i32) -> (i32, i32) {
    %c1_i32 = arith.constant 1 : i32
    %0 = arith.muli %arg0, %c1_i32 : i32
    %1 = arith.addi %0, %arg1 : i32
    %c0_i32 = arith.constant 0 : i32
    %2 = arith.minsi %1, %c0_i32 : i32
    %c0_i32_0 = arith.constant 0 : i32
    %c0_i32_1 = arith.constant 0 : i32
    return %2, %c0_i32_0 : i32, i32
  }
  func.func @transform_4(%arg0: i32, %arg1: i32) -> (i32, i32) {
    %c1_i32 = arith.constant 1 : i32
    %0 = arith.muli %arg0, %c1_i32 : i32
    %1 = arith.addi %0, %arg1 : i32
    %c0_i32 = arith.constant 0 : i32
    %2 = arith.minsi %1, %c0_i32 : i32
    %c0_i32_0 = arith.constant 0 : i32
    %c0_i32_1 = arith.constant 0 : i32
    return %2, %c0_i32_0 : i32, i32
  }
  func.func @transform_5(%arg0: i32, %arg1: i32) -> (i32, i32) {
    %c1_i32 = arith.constant 1 : i32
    %0 = arith.muli %arg0, %c1_i32 : i32
    %1 = arith.addi %0, %arg1 : i32
    %c0_i32 = arith.constant 0 : i32
    %2 = arith.minsi %1, %c0_i32 : i32
    %c0_i32_0 = arith.constant 0 : i32
    %c0_i32_1 = arith.constant 0 : i32
    return %2, %c0_i32_0 : i32, i32
  }
  func.func @transform_6(%arg0: i32, %arg1: i32) -> (i32, i32) {
    %c1_i32 = arith.constant 1 : i32
    %0 = arith.muli %arg0, %c1_i32 : i32
    %1 = arith.addi %0, %arg1 : i32
    %c0_i32 = arith.constant 0 : i32
    %2 = arith.minsi %1, %c0_i32 : i32
    %c0_i32_0 = arith.constant 0 : i32
    %c0_i32_1 = arith.constant 0 : i32
    return %2, %c0_i32_0 : i32, i32
  }
  func.func @transform_7(%arg0: i32, %arg1: i32) -> (i32, i32) {
    %c0_i32 = arith.constant 0 : i32
    %c0_i32_0 = arith.constant 0 : i32
    return %arg0, %c0_i32 : i32, i32
  }
}

</mosaic_0001>

<llo_original>
// kernel: mixed_squared_error.1
$region0: #{mixed_squared_error.1}
  #allocation0 [shape = 'u32[]', space=smem, size = 0x4, offset = 0x4, fixed_abs, tag = 'smem constant byte address 0x4 - core index']
  #allocation1 [shape = 'u32[72,128]{1,0:T(1,128)}', space=vmem, size = 0x9000, scoped, tag = 'internal scratch']
  #allocation2 [shape = 'f32[8,128]{1,0:T(8,128)}', space=vmem, size = 0x1000, scoped, tag = 'scratch operand']
  %s0 = inlined_call_operand.vmem [shape: f32[16,128], index: 0, kind: input, shape index: {}]
  %s1 = inlined_call_operand.vmem [shape: f32[16,128], index: 1, kind: input, shape index: {}]
  %s2 = inlined_call_operand.vmem [shape: f32[16,128], index: 2, kind: input, shape index: {}]
  %s3 = inlined_call_operand.vmem [shape: f32[16,128], index: 3, kind: input, shape index: {}]
  %s4 = inlined_call_operand.vmem [shape: f32[16,128], index: 4, kind: input, shape index: {}]
  %s5 = inlined_call_operand.vmem [shape: f32[16,128], index: 5, kind: input, shape index: {}]
  %s6 = inlined_call_operand.vmem [shape: f32[16,128], index: 6, kind: input, shape index: {}]
  %s7 = inlined_call_operand.vmem [shape: f32[8,128], index: 7, kind: output, shape index: {}]
  %s8 = sld [smem:[#allocation0]]
  $region46: #{mixed_squared_error.1} parent=0
    _
  %s10 = ssub.s32 1, %s8
  %s11 = scalar_select 0, %s10, %s8
  // Predicated region
  $region2: #{mixed_squared_error.1} parent=0 // pred_check
    _
  $region3: #{mixed_squared_error.1} parent=0 // pred_check_branch
    %13 = sbr.rel (0) target = $region5
  $region4: #{mixed_squared_error.1} parent=0 // pred_region
    %s14 = sadd.s32 0, 0
    %p15 = scmp.lt.s32.totalorder %s14, 0
    %s16 = scalar_select %p15, %s14, 0
    %s17 = smul.u32 2, %s16
    %p18 = scmp.lt.s32.totalorder %s17, 1
    %s19 = scalar_select %p18, %s17, 1
    %s20 = smul.addr %s19, 8
    %s21 = scalar_lea.vmem %s0, %s20
    %s22 = sadd.s32 0, 0
    %p23 = scmp.lt.s32.totalorder %s22, 0
    %s24 = scalar_select %p23, %s22, 0
    %s25 = smul.u32 2, %s24
  $region5: #{mixed_squared_error.1} parent=0 // pred_fallthru
    _
  // Predicated region
  $region6: #{mixed_squared_error.1} parent=0 // pred_check
    _
  $region7: #{mixed_squared_error.1} parent=0 // pred_check_branch
    %27 = sbr.rel (0) target = $region9
  $region8: #{mixed_squared_error.1} parent=0 // pred_region
    %s28 = sadd.s32 0, 0
    %p29 = scmp.lt.s32.totalorder %s28, 0
    %s30 = scalar_select %p29, %s28, 0
    %s31 = smul.u32 2, %s30
    %p32 = scmp.lt.s32.totalorder %s31, 1
    %s33 = scalar_select %p32, %s31, 1
    %s34 = smul.addr %s33, 8
    %s35 = scalar_lea.vmem %s1, %s34
    %s36 = sadd.s32 0, 0
    %p37 = scmp.lt.s32.totalorder %s36, 0
    %s38 = scalar_select %p37, %s36, 0
    %s39 = smul.u32 2, %s38
  $region9: #{mixed_squared_error.1} parent=0 // pred_fallthru
    _
  // Predicated region
  $region10: #{mixed_squared_error.1} parent=0 // pred_check
    _
  $region11: #{mixed_squared_error.1} parent=0 // pred_check_branch
    %41 = sbr.rel (0) target = $region13
  $region12: #{mixed_squared_error.1} parent=0 // pred_region
    %s42 = sadd.s32 0, 0
    %p43 = scmp.lt.s32.totalorder %s42, 0
    %s44 = scalar_select %p43, %s42, 0
    %s45 = smul.u32 2, %s44
    %p46 = scmp.lt.s32.totalorder %s45, 1
    %s47 = scalar_select %p46, %s45, 1
    %s48 = smul.addr %s47, 8
    %s49 = scalar_lea.vmem %s2, %s48
    %s50 = sadd.s32 0, 0
    %p51 = scmp.lt.s32.totalorder %s50, 0
    %s52 = scalar_select %p51, %s50, 0
    %s53 = smul.u32 2, %s52
  $region13: #{mixed_squared_error.1} parent=0 // pred_fallthru
    _
  // Predicated region
  $region14: #{mixed_squared_error.1} parent=0 // pred_check
    _
  $region15: #{mixed_squared_error.1} parent=0 // pred_check_branch
    %55 = sbr.rel (0) target = $region17
  $region16: #{mixed_squared_error.1} parent=0 // pred_region
    %s56 = sadd.s32 0, 0
    %p57 = scmp.lt.s32.totalorder %s56, 0
    %s58 = scalar_select %p57, %s56, 0
    %s59 = smul.u32 2, %s58
    %p60 = scmp.lt.s32.totalorder %s59, 1
    %s61 = scalar_select %p60, %s59, 1
    %s62 = smul.addr %s61, 8
    %s63 = scalar_lea.vmem %s3, %s62
    %s64 = sadd.s32 0, 0
    %p65 = scmp.lt.s32.totalorder %s64, 0
    %s66 = scalar_select %p65, %s64, 0
    %s67 = smul.u32 2, %s66
  $region17: #{mixed_squared_error.1} parent=0 // pred_fallthru
    _
  // Predicated region
  $region18: #{mixed_squared_error.1} parent=0 // pred_check
    _
  $region19: #{mixed_squared_error.1} parent=0 // pred_check_branch
    %69 = sbr.rel (0) target = $region21
  $region20: #{mixed_squared_error.1} parent=0 // pred_region
    %s70 = sadd.s32 0, 0
    %p71 = scmp.lt.s32.totalorder %s70, 0
    %s72 = scalar_select %p71, %s70, 0
    %s73 = smul.u32 2, %s72
    %p74 = scmp.lt.s32.totalorder %s73, 1
    %s75 = scalar_select %p74, %s73, 1
    %s76 = smul.addr %s75, 8
    %s77 = scalar_lea.vmem %s4, %s76
    %s78 = sadd.s32 0, 0
    %p79 = scmp.lt.s32.totalorder %s78, 0
    %s80 = scalar_select %p79, %s78, 0
    %s81 = smul.u32 2, %s80
  $region21: #{mixed_squared_error.1} parent=0 // pred_fallthru
    _
  // Predicated region
  $region22: #{mixed_squared_error.1} parent=0 // pred_check
    _
  $region23: #{mixed_squared_error.1} parent=0 // pred_check_branch
    %83 = sbr.rel (0) target = $region25
  $region24: #{mixed_squared_error.1} parent=0 // pred_region
    %s84 = sadd.s32 0, 0
    %p85 = scmp.lt.s32.totalorder %s84, 0
    %s86 = scalar_select %p85, %s84, 0
    %s87 = smul.u32 2, %s86
    %p88 = scmp.lt.s32.totalorder %s87, 1
    %s89 = scalar_select %p88, %s87, 1
    %s90 = smul.addr %s89, 8
    %s91 = scalar_lea.vmem %s5, %s90
    %s92 = sadd.s32 0, 0
    %p93 = scmp.lt.s32.totalorder %s92, 0
    %s94 = scalar_select %p93, %s92, 0
    %s95 = smul.u32 2, %s94
  $region25: #{mixed_squared_error.1} parent=0 // pred_fallthru
    _
  // Predicated region
  $region26: #{mixed_squared_error.1} parent=0 // pred_check
    _
  $region27: #{mixed_squared_error.1} parent=0 // pred_check_branch
    %97 = sbr.rel (0) target = $region29
  $region28: #{mixed_squared_error.1} parent=0 // pred_region
    %s98 = sadd.s32 0, 0
    %p99 = scmp.lt.s32.totalorder %s98, 0
    %s100 = scalar_select %p99, %s98, 0
    %s101 = smul.u32 2, %s100
    %p102 = scmp.lt.s32.totalorder %s101, 1
    %s103 = scalar_select %p102, %s101, 1
    %s104 = smul.addr %s103, 8
    %s105 = scalar_lea.vmem %s6, %s104
    %s106 = sadd.s32 0, 0
    %p107 = scmp.lt.s32.totalorder %s106, 0
    %s108 = scalar_select %p107, %s106, 0
    %s109 = smul.u32 2, %s108
  $region29: #{mixed_squared_error.1} parent=0 // pred_fallthru
    _
  %s110 = sadd.s32 0, 0
  %p111 = scmp.lt.s32.totalorder %s110, 0
  %s112 = scalar_select %p111, %s110, 0
  %s113 = smul.u32 2, %s112
  %p114 = scmp.lt.s32.totalorder %s113, 1
  %s115 = scalar_select %p114, %s113, 1
  %s116 = smul.addr %s115, 8
  %s117 = scalar_lea.vmem %s0, %s116
  %s118 = sadd.s32 0, 0
  %p119 = scmp.lt.s32.totalorder %s118, 0
  %s120 = scalar_select %p119, %s118, 0
  %s121 = smul.u32 2, %s120
  %p122 = scmp.lt.s32.totalorder %s121, 1
  %s123 = scalar_select %p122, %s121, 1
  %s124 = smul.addr %s123, 8
  %s125 = scalar_lea.vmem %s1, %s124
  %s126 = sadd.s32 0, 0
  %p127 = scmp.lt.s32.totalorder %s126, 0
  %s128 = scalar_select %p127, %s126, 0
  %s129 = smul.u32 2, %s128
  %p130 = scmp.lt.s32.totalorder %s129, 1
  %s131 = scalar_select %p130, %s129, 1
  %s132 = smul.addr %s131, 8
  %s133 = scalar_lea.vmem %s2, %s132
  %s134 = sadd.s32 0, 0
  %p135 = scmp.lt.s32.totalorder %s134, 0
  %s136 = scalar_select %p135, %s134, 0
  %s137 = smul.u32 2, %s136
  %p138 = scmp.lt.s32.totalorder %s137, 1
  %s139 = scalar_select %p138, %s137, 1
  %s140 = smul.addr %s139, 8
  %s141 = scalar_lea.vmem %s3, %s140
  %s142 = sadd.s32 0, 0
  %p143 = scmp.lt.s32.totalorder %s142, 0
  %s144 = scalar_select %p143, %s142, 0
  %s145 = smul.u32 2, %s144
  %p146 = scmp.lt.s32.totalorder %s145, 1
  %s147 = scalar_select %p146, %s145, 1
  %s148 = smul.addr %s147, 8
  %s149 = scalar_lea.vmem %s4, %s148
  %s150 = sadd.s32 0, 0
  %p151 = scmp.lt.s32.totalorder %s150, 0
  %s152 = scalar_select %p151, %s150, 0
  %s153 = smul.u32 2, %s152
  %p154 = scmp.lt.s32.totalorder %s153, 1
  %s155 = scalar_select %p154, %s153, 1
  %s156 = smul.addr %s155, 8
  %s157 = scalar_lea.vmem %s5, %s156
  %s158 = sadd.s32 0, 0
  %p159 = scmp.lt.s32.totalorder %s158, 0
  %s160 = scalar_select %p159, %s158, 0
  %s161 = smul.u32 2, %s160
  %p162 = scmp.lt.s32.totalorder %s161, 1
  %s163 = scalar_select %p162, %s161, 1
  %s164 = smul.addr %s163, 8
  %s165 = scalar_lea.vmem %s6, %s164
  %s166 = sadd.s32 0, 0
  %p167 = scmp.lt.s32.totalorder %s166, 0
  %s168 = scalar_select %p167, %s166, 0
  %s169 = smul.u32 2, %s168
  %p170 = scmp.lt.s32.totalorder %s169, 1
  %s171 = scalar_select %p170, %s169, 1
  %s172 = smul.addr %s171, 8
  %s173 = scalar_lea.vmem %s0, %s172
  %s174 = sadd.s32 0, 0
  %p175 = scmp.lt.s32.totalorder %s174, 0
  %s176 = scalar_select %p175, %s174, 0
  %s177 = smul.u32 2, %s176
  %s178 = sadd.s32 0, 0
  %p179 = scmp.lt.s32.totalorder %s178, 0
  %s180 = scalar_select %p179, %s178, 0
  %s181 = smul.u32 2, %s180
  %p182 = scmp.lt.s32.totalorder %s181, 1
  %s183 = scalar_select %p182, %s181, 1
  %s184 = smul.addr %s183, 8
  %s185 = scalar_lea.vmem %s1, %s184
  %s186 = sadd.s32 0, 0
  %p187 = scmp.lt.s32.totalorder %s186, 0
  %s188 = scalar_select %p187, %s186, 0
  %s189 = smul.u32 2, %s188
  %s190 = sadd.s32 0, 0
  %p191 = scmp.lt.s32.totalorder %s190, 0
  %s192 = scalar_select %p191, %s190, 0
  %s193 = smul.u32 2, %s192
  %p194 = scmp.lt.s32.totalorder %s193, 1
  %s195 = scalar_select %p194, %s193, 1
  %s196 = smul.addr %s195, 8
  %s197 = scalar_lea.vmem %s2, %s196
  %s198 = sadd.s32 0, 0
  %p199 = scmp.lt.s32.totalorder %s198, 0
  %s200 = scalar_select %p199, %s198, 0
  %s201 = smul.u32 2, %s200
  %s202 = sadd.s32 0, 0
  %p203 = scmp.lt.s32.totalorder %s202, 0
  %s204 = scalar_select %p203, %s202, 0
  %s205 = smul.u32 2, %s204
  %p206 = scmp.lt.s32.totalorder %s205, 1
  %s207 = scalar_select %p206, %s205, 1
  %s208 = smul.addr %s207, 8
  %s209 = scalar_lea.vmem %s3, %s208
  %s210 = sadd.s32 0, 0
  %p211 = scmp.lt.s32.totalorder %s210, 0
  %s212 = scalar_select %p211, %s210, 0
  %s213 = smul.u32 2, %s212
  %s214 = sadd.s32 0, 0
  %p215 = scmp.lt.s32.totalorder %s214, 0
  %s216 = scalar_select %p215, %s214, 0
  %s217 = smul.u32 2, %s216
  %p218 = scmp.lt.s32.totalorder %s217, 1
  %s219 = scalar_select %p218, %s217, 1
  %s220 = smul.addr %s219, 8
  %s221 = scalar_lea.vmem %s4, %s220
  %s222 = sadd.s32 0, 0
  %p223 = scmp.lt.s32.totalorder %s222, 0
  %s224 = scalar_select %p223, %s222, 0
  %s225 = smul.u32 2, %s224
  %s226 = sadd.s32 0, 0
  %p227 = scmp.lt.s32.totalorder %s226, 0
  %s228 = scalar_select %p227, %s226, 0
  %s229 = smul.u32 2, %s228
  %p230 = scmp.lt.s32.totalorder %s229, 1
  %s231 = scalar_select %p230, %s229, 1
  %s232 = smul.addr %s231, 8
  %s233 = scalar_lea.vmem %s5, %s232
  %s234 = sadd.s32 0, 0
  %p235 = scmp.lt.s32.totalorder %s234, 0
  %s236 = scalar_select %p235, %s234, 0
  %s237 = smul.u32 2, %s236
  %s238 = sadd.s32 0, 0
  %p239 = scmp.lt.s32.totalorder %s238, 0
  %s240 = scalar_select %p239, %s238, 0
  %s241 = smul.u32 2, %s240
  %p242 = scmp.lt.s32.totalorder %s241, 1
  %s243 = scalar_select %p242, %s241, 1
  %s244 = smul.addr %s243, 8
  %s245 = scalar_lea.vmem %s6, %s244
  %s246 = sadd.s32 0, 0
  %p247 = scmp.lt.s32.totalorder %s246, 0
  %s248 = scalar_select %p247, %s246, 0
  %s249 = smul.u32 2, %s248
  %p250 = scmp.eq.s32.totalorder 0, 0
  // Predicated region
  $region30: #{mixed_squared_error.1} parent=0 // pred_check
    %p251 = pneg %p250
  $region31: #{mixed_squared_error.1} parent=0 // pred_check_branch
    %253 = sbr.rel (%p251) target = $region33
  $region32: #{mixed_squared_error.1} parent=0 // pred_region
    %254 = vst [vmem:[#allocation2] sm:$0xff] 0.0
  $region33: #{mixed_squared_error.1} parent=0 // pred_fallthru
    _
  %v255 = vld [vmem:[%s173] sm:$0xff]
  %v256 = vld [vmem:[%s173 + $0x8] sm:$0xff]
  %v257 = vld [vmem:[%s185] sm:$0xff]
  %v258 = vld [vmem:[%s185 + $0x8] sm:$0xff]
  %v259 = vld [vmem:[%s197] sm:$0xff]
  %v260 = vld [vmem:[%s197 + $0x8] sm:$0xff]
  %v261 = vld [vmem:[%s209] sm:$0xff]
  %v262 = vld [vmem:[%s209 + $0x8] sm:$0xff]
  %v263 = vld [vmem:[%s221] sm:$0xff]
  %v264 = vld [vmem:[%s221 + $0x8] sm:$0xff]
  %v265 = vld [vmem:[%s233] sm:$0xff]
  %v266 = vld [vmem:[%s233 + $0x8] sm:$0xff]
  %v267 = vld [vmem:[%s245] sm:$0xff]
  %v268 = vld [vmem:[%s245 + $0x8] sm:$0xff]
  %v269 = vsub.f32 %v255, %v261
  %v270 = vsub.f32 %v256, %v262
  %v271 = vsub.f32 %v257, %v263
  %v272 = vsub.f32 %v258, %v264
  %v273 = vsub.f32 %v259, %v265
  %v274 = vsub.f32 %v260, %v266
  %v275 = vsub.f32 %v255, %v267
  %v276 = vsub.f32 %v256, %v268
  %v277 = vsub.f32 %v259, %v267
  %v278 = vsub.f32 %v260, %v268
  %v279 = vsub.f32 %v257, %v267
  %v280 = vsub.f32 %v258, %v268
  %v281 = vsub.f32 %v255, %v257
  %v282 = vsub.f32 %v256, %v258
  %v283 = vsub.f32 %v255, %v259
  %v284 = vsub.f32 %v256, %v260
  %v285 = vsub.f32 %v257, %v259
  %v286 = vsub.f32 %v258, %v260
  %v287 = vmul.f32 %v269, %v269
  %v288 = vmul.f32 %v270, %v270
  %v289 = vmul.f32 %v271, %v271
  %v290 = vmul.f32 %v272, %v272
  %v291 = vadd.f32 %v287, %v289
  %v292 = vadd.f32 %v288, %v290
  %v293 = vmul.f32 %v273, %v273
  %v294 = vmul.f32 %v274, %v274
  %v295 = vadd.f32 %v291, %v293
  %v296 = vadd.f32 %v292, %v294
  %v297 = vmul.f32 %v281, %v281
  %v298 = vmul.f32 %v282, %v282
  %v299 = vmul.f32 %v283, %v283
  %v300 = vmul.f32 %v284, %v284
  %v301 = vadd.f32 %v297, %v299
  %v302 = vadd.f32 %v298, %v300
  %v303 = vmul.f32 %v285, %v285
  %v304 = vmul.f32 %v286, %v286
  %v305 = vadd.f32 %v301, %v303
  %v306 = vadd.f32 %v302, %v304
  %v307 = vmul.f32 %v305, 0.005
  %v308 = vmul.f32 %v306, 0.005
  %v309 = vsub.f32 %v295, %v307
  %v310 = vsub.f32 %v296, %v308
  %v311 = vmul.f32 %v275, %v275
  %v312 = vmul.f32 %v276, %v276
  %v313 = vmul.f32 %v277, %v277
  %v314 = vmul.f32 %v278, %v278
  %v315 = vadd.f32 %v311, %v313
  %v316 = vadd.f32 %v312, %v314
  %v317 = vmul.f32 %v315, 0.05
  %v318 = vmul.f32 %v316, 0.05
  %v319 = vsub.f32 %v309, %v317
  %v320 = vsub.f32 %v310, %v318
  %v321 = vmul.f32 %v279, %v279
  %v322 = vmul.f32 %v280, %v280
  %v323 = vmul.f32 %v321, 0.08
  %v324 = vmul.f32 %v322, 0.08
  %v325 = vsub.f32 %v319, %v323
  %v326 = vsub.f32 %v320, %v324
  %v327 = vld [vmem:[#allocation2] sm:$0xff]
  %v328 = vadd.f32 %v325, %v326
  %v329 = vadd.f32 %v327, %v328
  %330 = vst [vmem:[#allocation2] sm:$0xff] %v329
  // Predicated region
  $region34: #{mixed_squared_error.1} parent=0 // pred_check
    %p331 = pneg %p250
  $region35: #{mixed_squared_error.1} parent=0 // pred_check_branch
    %333 = sbr.rel (%p331) target = $region37
  $region36: #{mixed_squared_error.1} parent=0 // pred_region
    %v334 = vld [vmem:[#allocation2] sm:$0xff]
    %335 = vst [vmem:[%s7] sm:$0xff] %v334
  $region37: #{mixed_squared_error.1} parent=0 // pred_fallthru
    _
  // Predicated region
  $region38: #{mixed_squared_error.1} parent=0 // pred_check
    _
  $region39: #{mixed_squared_error.1} parent=0 // pred_check_branch
    %337 = sbr.rel (0) target = $region41
  $region40: #{mixed_squared_error.1} parent=0 // pred_region
    _
  $region41: #{mixed_squared_error.1} parent=0 // pred_fallthru
    _
  // Predicated region
  $region42: #{mixed_squared_error.1} parent=0 // pred_check
    _
  $region43: #{mixed_squared_error.1} parent=0 // pred_check_branch
    %339 = sbr.rel (0) target = $region45
  $region44: #{mixed_squared_error.1} parent=0 // pred_region
    _
  $region45: #{mixed_squared_error.1} parent=0 // pred_fallthru
    _

</llo_original>
